<compile_context>
chip_gen: v7x
topology: tpu7x:2x2x1
jax: 0.10.0
libtpu: 0.0.40
codegen_flags: <defaults>
</compile_context>

<pallas_src>
import functools

import jax
import jax.numpy as jnp
from jax.experimental import pallas as pl
from jax.experimental.pallas import tpu as pltpu


_LANE = 128
_MAX_TP = 32 * 1024                       # pixel-tile ceiling (sweepable)
_VMEM_DATA_BUDGET = 24 * 1024 * 1024      # per-step tile-data target (all gens)
_VMEM_LIMIT_BYTES = 48 * 1024 * 1024      # explicit scoped-VMEM limit w/ headroom
_MAX_B_BLK = 8                            # cap on batch blocking (unroll size)


def _make_mlp_kernel(b_blk):
    def _mlp_kernel(x_ref, w1_ref, b1_ref, w2_ref, b2_ref, o_ref):
        # x_ref:  (b_blk, Cin, tp)   pixel tile, pixels on the lane axis
        # w1_ref: (Mid, Cin)         b1_ref: (Mid, 1)   [f32]
        # w2_ref: (Cout, Mid)        b2_ref: (Cout, 1)  [f32]
        # o_ref:  (b_blk, Cout, tp)
        w1 = w1_ref[...]
        w2 = w2_ref[...]
        b1 = b1_ref[...]
        b2 = b2_ref[...]
        for bi in range(b_blk):                       # static, unrolled
            x = x_ref[bi].astype(w1.dtype)            # (Cin, tp) MXU operand dtype
            h = jnp.dot(w1, x, preferred_element_type=jnp.float32)
            h = h + b1                                # (Mid, tp), f32
            h = jnp.maximum(h, 0.1 * h)               # leaky_relu(0.1), f32 VPU
            y = jnp.dot(w2, h.astype(w2.dtype),
                        preferred_element_type=jnp.float32)
            y = y + b2                                # (Cout, tp), f32
            o_ref[bi] = y.astype(o_ref.dtype)
    return _mlp_kernel


def _largest_divisor_leq(n, cap):
    cap = max(1, min(n, cap))
    for d in range(cap, 0, -1):
        if n % d == 0:
            return d
    return 1


def mlp_forward(x_nchw, w1, b1, w2, b2, *, tp=None, b_blk=None,
                compute_dtype=jnp.bfloat16):
    """Fused MLP forward.

    x_nchw: (B, Cin, H, W)
    w1: (Mid, Cin), b1: (Mid,), w2: (Cout, Mid), b2: (Cout,)
    tp:   optional pixel-tile override (rounded to a multiple of 128).
    b_blk: optional batch-block override (rounded down to a divisor of B).
    compute_dtype: MXU operand dtype (bf16 default, f32 accumulation either way).
    Returns (B, Cout, H, W); output dtype follows x_nchw.dtype.
    """
    B, Cin, H, W = x_nchw.shape
    Mid, Cin_w = w1.shape
    Cout, Mid_w = w2.shape
    assert Cin_w == Cin and Mid_w == Mid and b1.shape == (Mid,) and b2.shape == (Cout,)

    P = H * W
    x = x_nchw.reshape(B, Cin, P)       # free reshape: NCHW is the native layout

    # ---- VMEM-budgeted pixel tile -------------------------------------
    in_b = jnp.dtype(x_nchw.dtype).itemsize
    cd_b = jnp.dtype(compute_dtype).itemsize
    # Per pixel-column per image per step: double-buffered x + out blocks,
    # f32 intermediate h, compute-dtype copies of x and h, f32 y before cast.
    col_bytes = (2 * Cin * in_b + 2 * Cout * in_b
                 + Mid * 4 + Cin * cd_b + Mid * cd_b + Cout * 4)
    tp_cap = max(_LANE, (_VMEM_DATA_BUDGET // col_bytes) // _LANE * _LANE)
    tp_cap = min(tp_cap, _MAX_TP)
    tp_req = tp if tp is not None else tp_cap

    if P > _LANE:
        tp_eff = max(_LANE, (min(tp_req, P) // _LANE) * _LANE)
    else:
        tp_eff = P                      # full-dim block (allowed for any size)
    n_tiles = pl.cdiv(P, tp_eff)

    # ---- batch blocking (amortize per-step overhead for small images) --
    if b_blk is None:
        cap = max(1, min(_MAX_B_BLK, tp_cap // max(tp_eff, 1)))
        bb = _largest_divisor_leq(B, cap)
        # Keep at least 2 grid steps when possible (megacore on v7x).
        while bb > 1 and (B // bb) * n_tiles < 2:
            bb = _largest_divisor_leq(B, bb - 1)
    else:
        bb = _largest_divisor_leq(B, b_blk)

    # ---- weight / bias prep (cast once, outside the kernel) ------------
    w1c = w1.astype(compute_dtype)
    w2c = w2.astype(compute_dtype)
    b1c = b1.reshape(Mid, 1).astype(jnp.float32)
    b2c = b2.reshape(Cout, 1).astype(jnp.float32)

    out = pl.pallas_call(
        _make_mlp_kernel(bb),
        out_shape=jax.ShapeDtypeStruct((B, Cout, P), x_nchw.dtype),
        grid_spec=pltpu.PrefetchScalarGridSpec(
            num_scalar_prefetch=0,
            grid=(B // bb, n_tiles),
            in_specs=[
                pl.BlockSpec((bb, Cin, tp_eff), lambda b, j: (b, 0, j)),
                pl.BlockSpec((Mid, Cin), lambda b, j: (0, 0)),
                pl.BlockSpec((Mid, 1), lambda b, j: (0, 0)),
                pl.BlockSpec((Cout, Mid), lambda b, j: (0, 0)),
                pl.BlockSpec((Cout, 1), lambda b, j: (0, 0)),
            ],
            out_specs=pl.BlockSpec((bb, Cout, tp_eff), lambda b, j: (b, 0, j)),
        ),
        compiler_params=pltpu.CompilerParams(
            dimension_semantics=("parallel", "parallel"),
            vmem_limit_bytes=_VMEM_LIMIT_BYTES,
        ),
    )(x, w1c, b1c, w2c, b2c)

    return out.reshape(B, Cout, H, W)


def _reference_forward(x_nchw, w1, b1, w2, b2):
    """Pure-JAX f32 reference (no Pallas) for correctness checks."""
    x = x_nchw.astype(jnp.float32)
    h = jnp.einsum("bchw,mc->bmhw", x, w1.astype(jnp.float32)) \
        + b1.astype(jnp.float32)[None, :, None, None]
    h = jnp.where(h > 0, h, 0.1 * h)
    y = jnp.einsum("bmhw,om->bohw", h, w2.astype(jnp.float32)) \
        + b2.astype(jnp.float32)[None, :, None, None]
    return y


def init_mlp_params(key, in_channels, out_channels, mlp_ratio=2, dtype=jnp.float32):
    """Deterministic kaiming-normal-ish init (basic_module_init analogue).

    basic_module_init zeroes conv biases; we use small non-zero biases so the
    kernel's bias path is actually exercised by the numeric check.
    """
    mid = int(out_channels * mlp_ratio * 1.0)
    k1, k2, k3, k4 = jax.random.split(key, 4)
    w1 = jax.random.normal(k1, (mid, in_channels), dtype) * (2.0 / in_channels) ** 0.5
    w2 = jax.random.normal(k2, (out_channels, mid), dtype) * (2.0 / mid) ** 0.5
    b1 = 0.1 * jax.random.normal(k3, (mid,), dtype)
    b2 = 0.1 * jax.random.normal(k4, (out_channels,), dtype)
    return w1, b1, w2, b2


if __name__ == "__main__":
    key = jax.random.PRNGKey(0)
    k_x, k_p = jax.random.split(key)

    # Shapes consistent with the module: MLP(32, 16, mlp_ratio=2) -> mid=32.
    B, in_channels, out_channels, mlp_ratio = 2, 32, 16, 2
    H = W = 16

    w1, b1, w2, b2 = init_mlp_params(k_p, in_channels, out_channels, mlp_ratio)
    x = jax.random.normal(k_x, (B, in_channels, H, W), dtype=jnp.float32)
    ref = _reference_forward(x, w1, b1, w2, b2)

    fwd = jax.jit(mlp_forward, static_argnames=("tp", "b_blk", "compute_dtype"))

    # 1) f32-compute path: bit-tight check of the fused-conv semantics.
    out_f32 = jax.block_until_ready(
        fwd(x, w1, b1, w2, b2, compute_dtype=jnp.float32))
    assert out_f32.shape == (B, out_channels, H, W), out_f32.shape
    assert jnp.allclose(out_f32, ref, atol=1e-4, rtol=1e-4)

    # 2) Default path: bf16 MXU operands, f32 accumulation / bias / leaky_relu.
    out_def = jax.block_until_ready(fwd(x, w1, b1, w2, b2))
    assert out_def.shape == (B, out_channels, H, W), out_def.shape
    assert jnp.allclose(out_def, ref, atol=1e-1, rtol=1e-1)

    # 3) H*W not a multiple of 128 -> cdiv grid + masked partial pixel tile
    #    (also auto batch-blocking b_blk=2 for these small images).
    x2 = jax.random.normal(jax.random.fold_in(k_x, 1),
                           (B, in_channels, 20, 20), dtype=jnp.float32)
    out2 = jax.block_until_ready(fwd(x2, w1, b1, w2, b2))
    ref2 = _reference_forward(x2, w1, b1, w2, b2)
    assert out2.shape == (B, out_channels, 20, 20), out2.shape
    assert jnp.allclose(out2, ref2, atol=1e-1, rtol=1e-1)

    # 4) Larger batch of small images -> exercises b_blk > 1 auto path.
    x3 = jax.random.normal(jax.random.fold_in(k_x, 2),
                           (8, in_channels, H, W), dtype=jnp.float32)
    out3 = jax.block_until_ready(fwd(x3, w1, b1, w2, b2))
    ref3 = _reference_forward(x3, w1, b1, w2, b2)
    assert out3.shape == (8, out_channels, H, W), out3.shape
    assert jnp.allclose(out3, ref3, atol=1e-1, rtol=1e-1)

    # 5) Forced small pixel tile -> multiple pixel tiles per image + b_blk=2.
    x4 = jax.random.normal(jax.random.fold_in(k_x, 3),
                           (B, in_channels, 32, 32), dtype=jnp.float32)
    out4 = jax.block_until_ready(fwd(x4, w1, b1, w2, b2, tp=128))
    ref4 = _reference_forward(x4, w1, b1, w2, b2)
    assert out4.shape == (B, out_channels, 32, 32), out4.shape
    assert jnp.allclose(out4, ref4, atol=1e-1, rtol=1e-1)

    # 6) bf16 activations/weights end-to-end (halves HBM traffic on v6e/v7x);
    #    output dtype follows x dtype -> bf16.
    outb = jax.block_until_ready(
        fwd(x.astype(jnp.bfloat16),
            w1.astype(jnp.bfloat16), b1,
            w2.astype(jnp.bfloat16), b2))
    assert outb.dtype == jnp.bfloat16
    assert jnp.allclose(outb.astype(jnp.float32), ref, atol=2e-1, rtol=2e-1)

    print("KERNEL_OK")
</pallas_src>

<mosaic_0001>
module attributes {stable_mosaic.version = 11 : i64} {
  func.func @_mlp_kernel(%arg0: i32, %arg1: i32, %arg2: memref<1x32x256xf32, #tpu.memory_space<vmem>>, %arg3: memref<32x32xf32, #tpu.memory_space<vmem>>, %arg4: memref<32x1xf32, #tpu.memory_space<vmem>>, %arg5: memref<16x32xf32, #tpu.memory_space<vmem>>, %arg6: memref<16x1xf32, #tpu.memory_space<vmem>>, %arg7: memref<1x16x256xf32, #tpu.memory_space<vmem>>) attributes {dimension_semantics = [#tpu.dimension_semantics<parallel>, #tpu.dimension_semantics<parallel>], iteration_bounds = array<i64: 2, 1>, scalar_prefetch = 0 : i64, scratch_operands = 0 : i64, tpu.core_type = #tpu.core_type<tc>, window_params = [{transform_indices = @transform_0, window_bounds = array<i64: 1, 32, 256>}, {pipeline_mode = #tpu.pipeline_mode<synchronous>, transform_indices = @transform_1, window_bounds = array<i64: 32, 32>}, {pipeline_mode = #tpu.pipeline_mode<synchronous>, transform_indices = @transform_2, window_bounds = array<i64: 32, 1>}, {pipeline_mode = #tpu.pipeline_mode<synchronous>, transform_indices = @transform_3, window_bounds = array<i64: 16, 32>}, {pipeline_mode = #tpu.pipeline_mode<synchronous>, transform_indices = @transform_4, window_bounds = array<i64: 16, 1>}, {transform_indices = @transform_5, window_bounds = array<i64: 1, 16, 256>}]} {
    %c0 = arith.constant 0 : index
    %c0_0 = arith.constant 0 : index
    %0 = vector.load %arg3[%c0, %c0_0] : memref<32x32xf32, #tpu.memory_space<vmem>>, vector<32x32xf32>
    %c0_1 = arith.constant 0 : index
    %c0_2 = arith.constant 0 : index
    %1 = vector.load %arg5[%c0_1, %c0_2] : memref<16x32xf32, #tpu.memory_space<vmem>>, vector<16x32xf32>
    %c0_3 = arith.constant 0 : index
    %c0_4 = arith.constant 0 : index
    %2 = vector.load %arg4[%c0_3, %c0_4] : memref<32x1xf32, #tpu.memory_space<vmem>>, vector<32x1xf32>
    %c0_5 = arith.constant 0 : index
    %c0_6 = arith.constant 0 : index
    %3 = vector.load %arg6[%c0_5, %c0_6] : memref<16x1xf32, #tpu.memory_space<vmem>>, vector<16x1xf32>
    %c0_7 = arith.constant 0 : index
    %c0_8 = arith.constant 0 : index
    %c0_9 = arith.constant 0 : index
    %4 = vector.load %arg2[%c0_7, %c0_8, %c0_9] : memref<1x32x256xf32, #tpu.memory_space<vmem>>, vector<1x32x256xf32>
    %5 = vector.shape_cast %4 : vector<1x32x256xf32> to vector<32x256xf32>
    %cst = arith.constant dense<0.000000e+00> : vector<32x256xf32>
    %6 = tpu.matmul %0, %5, %cst {dimension_numbers = #tpu.dot_dimension_numbers<[1], [0], [0], [1], [0, 0, 1, 1], [], []>} : vector<32x32xf32>, vector<32x256xf32>, vector<32x256xf32> -> vector<32x256xf32>
    %7 = vector.broadcast %2 : vector<32x1xf32> to vector<32x256xf32>
    %8 = arith.addf %6, %7 : vector<32x256xf32>
    %cst_10 = arith.constant 1.000000e-01 : f32
    %9 = vector.broadcast %cst_10 : f32 to vector<32x256xf32>
    %10 = arith.mulf %9, %8 : vector<32x256xf32>
    %11 = arith.maximumf %8, %10 : vector<32x256xf32>
    %cst_11 = arith.constant dense<0.000000e+00> : vector<16x256xf32>
    %12 = tpu.matmul %1, %11, %cst_11 {dimension_numbers = #tpu.dot_dimension_numbers<[1], [0], [0], [1], [0, 0, 1, 1], [], []>} : vector<16x32xf32>, vector<32x256xf32>, vector<16x256xf32> -> vector<16x256xf32>
    %13 = vector.broadcast %3 : vector<16x1xf32> to vector<16x256xf32>
    %14 = arith.addf %12, %13 : vector<16x256xf32>
    %c0_12 = arith.constant 0 : index
    %c0_13 = arith.constant 0 : index
    %c0_14 = arith.constant 0 : index
    %15 = vector.load %arg7[%c0_12, %c0_13, %c0_14] : memref<1x16x256xf32, #tpu.memory_space<vmem>>, vector<1x16x256xf32>
    %16 = vector.shape_cast %15 : vector<1x16x256xf32> to vector<16x256xf32>
    %17 = vector.shape_cast %14 : vector<16x256xf32> to vector<1x16x256xf32>
    tpu.vector_store %arg7[%c0_12, %c0_13, %c0_14], %17 {strides = array<i32>} : memref<1x16x256xf32, #tpu.memory_space<vmem>>, vector<1x16x256xf32>,
    return
  }
  func.func @transform_0(%arg0: i32, %arg1: i32) -> (i32, i32, i32) {
    %c0_i32 = arith.constant 0 : i32
    %c0_i32_0 = arith.constant 0 : i32
    return %arg0, %c0_i32, %arg1 : i32, i32, i32
  }
  func.func @transform_1(%arg0: i32, %arg1: i32) -> (i32, i32) {
    %c0_i32 = arith.constant 0 : i32
    %c0_i32_0 = arith.constant 0 : i32
    %c0_i32_1 = arith.constant 0 : i32
    return %c0_i32, %c0_i32_0 : i32, i32
  }
  func.func @transform_2(%arg0: i32, %arg1: i32) -> (i32, i32) {
    %c0_i32 = arith.constant 0 : i32
    %c0_i32_0 = arith.constant 0 : i32
    %c0_i32_1 = arith.constant 0 : i32
    return %c0_i32, %c0_i32_0 : i32, i32
  }
  func.func @transform_3(%arg0: i32, %arg1: i32) -> (i32, i32) {
    %c0_i32 = arith.constant 0 : i32
    %c0_i32_0 = arith.constant 0 : i32
    %c0_i32_1 = arith.constant 0 : i32
    return %c0_i32, %c0_i32_0 : i32, i32
  }
  func.func @transform_4(%arg0: i32, %arg1: i32) -> (i32, i32) {
    %c0_i32 = arith.constant 0 : i32
    %c0_i32_0 = arith.constant 0 : i32
    %c0_i32_1 = arith.constant 0 : i32
    return %c0_i32, %c0_i32_0 : i32, i32
  }
  func.func @transform_5(%arg0: i32, %arg1: i32) -> (i32, i32, i32) {
    %c0_i32 = arith.constant 0 : i32
    %c0_i32_0 = arith.constant 0 : i32
    return %arg0, %c0_i32, %arg1 : i32, i32, i32
  }
}

</mosaic_0001>

<llo_original>
// kernel: mlp_forward.1
$region0: #{mlp_forward.1}
  #allocation0 [shape = 'u32[]', space=smem, size = 0x4, offset = 0x4, fixed_abs, tag = 'smem constant byte address 0x4 - core index']
  #allocation1 [shape = 'u32[144,128]{1,0:T(1,128)}', space=vmem, size = 0x12000, scoped, tag = 'internal scratch']
  %s0 = inlined_call_operand.vmem [shape: f32[2,32,256], index: 0, kind: input, shape index: {}]
  %s1 = inlined_call_operand.vmem [shape: f32[32,32], index: 1, kind: input, shape index: {}]
  %s2 = inlined_call_operand.vmem [shape: f32[32,1], index: 2, kind: input, shape index: {}]
  %s3 = inlined_call_operand.vmem [shape: f32[16,32], index: 3, kind: input, shape index: {}]
  %s4 = inlined_call_operand.vmem [shape: f32[16,1], index: 4, kind: input, shape index: {}]
  %s5 = inlined_call_operand.vmem [shape: f32[2,16,256], index: 5, kind: output, shape index: {}]
  %s6 = sld [smem:[#allocation0]]
  $region53: #{mlp_forward.1} parent=0
    _
  %s8 = ssub.s32 1, %s6
  %s9 = scalar_select 0, %s8, %s6
  loop: start=0, step=1, limit=4
  $region2: #{mlp_forward.1} parent=0 // loop_pre_header
    _
  $region3: #{mlp_forward.1} parent=0 // loop_header
    %s11 = sphi 0, %s15
    %p12 = scmp.ge.s32.totalorder %s11, 4
    %s18 = sphi 0, %s30
    %s19 = sphi 0, %s26
    %s20 = sphi 0, %s18
    %s21 = sphi 0, %s19
    %s22 = sphi 0, %s20
    %s23 = sphi 0, %s21
    %s35 = sphi 0, %s37
    %s38 = sphi 0, %s35
    %s39 = sphi 0, %s38
    %s55 = sphi 0, %s39
    %s59 = sphi 0, %s59
    %s61 = sphi 0, %s59
    %s62 = sphi 0, %s61
    %s76 = sphi 0, %s62
    %s80 = sphi 0, %s80
    %s82 = sphi 0, %s80
    %s83 = sphi 0, %s82
    %s97 = sphi 0, %s83
    %s101 = sphi 0, %s101
    %s103 = sphi 0, %s101
    %s104 = sphi 0, %s103
    %s118 = sphi 0, %s104
    %s122 = sphi 0, %s122
    %s124 = sphi 0, %s122
    %s125 = sphi 0, %s124
    %s139 = sphi 0, %s125
    %s147 = sphi 0, %s149
    %s150 = sphi 0, %s147
    %s151 = sphi 0, %s150
    %s167 = sphi 0, %s151
  $region4: #{mlp_forward.1} parent=0 // loop_header_branch
    %14 = sbr.rel (%p12) target = $region8
  $region5: #{mlp_forward.1} parent=0 // loop_body
    %s16 = ssub.s32 %s11, 1
    %s17 = ssub.s32 %s11, 2
    %s24 = sadd.s32 1, %s19
    %p25 = scmp.ge.s32.totalorder %s24, 1
    %s26 = scalar_select %p25, 0, %s24
    %s27 = sadd.s32 1, %s18
    %s28 = scalar_select %p25, %s27, %s18
    %p29 = scmp.ge.s32.totalorder %s28, 2
    %s30 = scalar_select %p29, 0, %s28
    %s31 = ssub.s32 %s18, %s30
    %s32 = ssub.s32 %s19, %s26
    %s33 = sor.u32 %s31, %s32
    %p34 = scmp.eq.s32.totalorder %s33, 0
    %s36 = sadd.s32 %s35, 1
    %s37 = scalar_select %p34, %s35, %s36
    %p40 = pneg %p34
    %p41 = scmp.eq.s32.totalorder %s11, 1
    %p42 = por %p40, %p41
    %p43 = scmp.ne.s32.totalorder %s35, %s38
    %p44 = scmp.eq.s32.totalorder %s11, 0
    %p45 = por %p43, %p44
    %p46 = scmp.ne.s32.totalorder %s35, %s38
    %p47 = scmp.eq.s32.totalorder %s16, 1
    %p48 = por %p46, %p47
    %p49 = scmp.ne.s32.totalorder %s38, %s39
    %p50 = scmp.eq.s32.totalorder %s16, 0
    %p51 = por %p49, %p50
    %p52 = scmp.ne.s32.totalorder %s38, %s39
    %p53 = scmp.eq.s32.totalorder %s17, 1
    %p54 = por %p52, %p53
    %p56 = scmp.ne.s32.totalorder %s39, %s55
    %p57 = scmp.eq.s32.totalorder %s17, 0
    %p58 = por %p56, %p57
    %s60 = sadd.s32 %s59, 1
    %p63 = scmp.eq.s32.totalorder %s11, 1
    %p64 = scmp.ne.s32.totalorder %s59, %s61
    %p65 = scmp.eq.s32.totalorder %s11, 0
    %p66 = por %p64, %p65
    %p67 = scmp.ne.s32.totalorder %s59, %s61
    %p68 = scmp.eq.s32.totalorder %s16, 1
    %p69 = por %p67, %p68
    %p70 = scmp.ne.s32.totalorder %s61, %s62
    %p71 = scmp.eq.s32.totalorder %s16, 0
    %p72 = por %p70, %p71
    %p73 = scmp.ne.s32.totalorder %s61, %s62
    %p74 = scmp.eq.s32.totalorder %s17, 1
    %p75 = por %p73, %p74
    %p77 = scmp.ne.s32.totalorder %s62, %s76
    %p78 = scmp.eq.s32.totalorder %s17, 0
    %p79 = por %p77, %p78
    %s81 = sadd.s32 %s80, 1
    %p84 = scmp.eq.s32.totalorder %s11, 1
    %p85 = scmp.ne.s32.totalorder %s80, %s82
    %p86 = scmp.eq.s32.totalorder %s11, 0
    %p87 = por %p85, %p86
    %p88 = scmp.ne.s32.totalorder %s80, %s82
    %p89 = scmp.eq.s32.totalorder %s16, 1
    %p90 = por %p88, %p89
    %p91 = scmp.ne.s32.totalorder %s82, %s83
    %p92 = scmp.eq.s32.totalorder %s16, 0
    %p93 = por %p91, %p92
    %p94 = scmp.ne.s32.totalorder %s82, %s83
    %p95 = scmp.eq.s32.totalorder %s17, 1
    %p96 = por %p94, %p95
    %p98 = scmp.ne.s32.totalorder %s83, %s97
    %p99 = scmp.eq.s32.totalorder %s17, 0
    %p100 = por %p98, %p99
    %s102 = sadd.s32 %s101, 1
    %p105 = scmp.eq.s32.totalorder %s11, 1
    %p106 = scmp.ne.s32.totalorder %s101, %s103
    %p107 = scmp.eq.s32.totalorder %s11, 0
    %p108 = por %p106, %p107
    %p109 = scmp.ne.s32.totalorder %s101, %s103
    %p110 = scmp.eq.s32.totalorder %s16, 1
    %p111 = por %p109, %p110
    %p112 = scmp.ne.s32.totalorder %s103, %s104
    %p113 = scmp.eq.s32.totalorder %s16, 0
    %p114 = por %p112, %p113
    %p115 = scmp.ne.s32.totalorder %s103, %s104
    %p116 = scmp.eq.s32.totalorder %s17, 1
    %p117 = por %p115, %p116
    %p119 = scmp.ne.s32.totalorder %s104, %s118
    %p120 = scmp.eq.s32.totalorder %s17, 0
    %p121 = por %p119, %p120
    %s123 = sadd.s32 %s122, 1
    %p126 = scmp.eq.s32.totalorder %s11, 1
    %p127 = scmp.ne.s32.totalorder %s122, %s124
    %p128 = scmp.eq.s32.totalorder %s11, 0
    %p129 = por %p127, %p128
    %p130 = scmp.ne.s32.totalorder %s122, %s124
    %p131 = scmp.eq.s32.totalorder %s16, 1
    %p132 = por %p130, %p131
    %p133 = scmp.ne.s32.totalorder %s124, %s125
    %p134 = scmp.eq.s32.totalorder %s16, 0
    %p135 = por %p133, %p134
    %p136 = scmp.ne.s32.totalorder %s124, %s125
    %p137 = scmp.eq.s32.totalorder %s17, 1
    %p138 = por %p136, %p137
    %p140 = scmp.ne.s32.totalorder %s125, %s139
    %p141 = scmp.eq.s32.totalorder %s17, 0
    %p142 = por %p140, %p141
    %s143 = ssub.s32 %s18, %s30
    %s144 = ssub.s32 %s19, %s26
    %s145 = sor.u32 %s143, %s144
    %p146 = scmp.eq.s32.totalorder %s145, 0
    %s148 = sadd.s32 %s147, 1
    %s149 = scalar_select %p146, %s147, %s148
    %p152 = pneg %p146
    %p153 = scmp.eq.s32.totalorder %s11, 1
    %p154 = por %p152, %p153
    %p155 = scmp.ne.s32.totalorder %s147, %s150
    %p156 = scmp.eq.s32.totalorder %s11, 0
    %p157 = por %p155, %p156
    %p158 = scmp.ne.s32.totalorder %s147, %s150
    %p159 = scmp.eq.s32.totalorder %s16, 1
    %p160 = por %p158, %p159
    %p161 = scmp.ne.s32.totalorder %s150, %s151
    %p162 = scmp.eq.s32.totalorder %s16, 0
    %p163 = por %p161, %p162
    %p164 = scmp.ne.s32.totalorder %s150, %s151
    %p165 = scmp.eq.s32.totalorder %s17, 1
    %p166 = por %p164, %p165
    %p168 = scmp.ne.s32.totalorder %s151, %s167
    %p169 = scmp.eq.s32.totalorder %s17, 0
    %p170 = por %p168, %p169
    %p171 = scmp.le.s32.totalorder 1, %s11
    %p172 = scmp.lt.s32.totalorder %s11, 3
    %p173 = pnand %p171, %p172
    %p174 = pneg %p173
    // Predicated region
    $region9: #{mlp_forward.1} parent=5 // pred_check
      _
    $region10: #{mlp_forward.1} parent=5 // pred_check_branch
      %176 = sbr.rel (%p173) target = $region12
    $region11: #{mlp_forward.1} parent=5 // pred_region
      %s177 = ssub.s32 %s11, 1
      // Predicated region
      $region13: #{mlp_forward.1} parent=11 // pred_check
        %p178 = pneg %p72
      $region14: #{mlp_forward.1} parent=11 // pred_check_branch
        %180 = sbr.rel (%p178) target = $region16
      $region15: #{mlp_forward.1} parent=11 // pred_region
        _
      $region16: #{mlp_forward.1} parent=11 // pred_fallthru
        _
      // Predicated region
      $region17: #{mlp_forward.1} parent=11 // pred_check
        %p181 = pneg %p93
      $region18: #{mlp_forward.1} parent=11 // pred_check_branch
        %183 = sbr.rel (%p181) target = $region20
      $region19: #{mlp_forward.1} parent=11 // pred_region
        _
      $region20: #{mlp_forward.1} parent=11 // pred_fallthru
        _
      // Predicated region
      $region21: #{mlp_forward.1} parent=11 // pred_check
        %p184 = pneg %p114
      $region22: #{mlp_forward.1} parent=11 // pred_check_branch
        %186 = sbr.rel (%p184) target = $region24
      $region23: #{mlp_forward.1} parent=11 // pred_region
        _
      $region24: #{mlp_forward.1} parent=11 // pred_fallthru
        _
      // Predicated region
      $region25: #{mlp_forward.1} parent=11 // pred_check
        %p187 = pneg %p135
      $region26: #{mlp_forward.1} parent=11 // pred_check_branch
        %189 = sbr.rel (%p187) target = $region28
      $region27: #{mlp_forward.1} parent=11 // pred_region
        _
      $region28: #{mlp_forward.1} parent=11 // pred_fallthru
        _
    $region12: #{mlp_forward.1} parent=5 // pred_fallthru
      _
    %p190 = scmp.lt.s32.totalorder %s11, 2
    // Predicated region
    $region29: #{mlp_forward.1} parent=5 // pred_check
      %p191 = pneg %p190
    $region30: #{mlp_forward.1} parent=5 // pred_check_branch
      %193 = sbr.rel (%p191) target = $region32
    $region31: #{mlp_forward.1} parent=5 // pred_region
      // Predicated region
      $region33: #{mlp_forward.1} parent=31 // pred_check
        %p194 = pneg %p45
      $region34: #{mlp_forward.1} parent=31 // pred_check_branch
        %196 = sbr.rel (%p194) target = $region36
      $region35: #{mlp_forward.1} parent=31 // pred_region
        %s197 = smul.u32 2, %s19
        %p198 = scmp.lt.s32.totalorder %s18, 1
        %s199 = scalar_select %p198, %s18, 1
        %p200 = scmp.lt.s32.totalorder %s197, 1
        %s201 = scalar_select %p200, %s197, 1
        %s202 = smul.addr %s199, 8
        %s203 = sadd.s32 %s201, %s202
        %s204 = smul.addr %s203, 8
        %s205 = scalar_lea.vmem %s0, %s204
        %s206 = smul.u32 2, %s19
      $region36: #{mlp_forward.1} parent=31 // pred_fallthru
        _
    $region32: #{mlp_forward.1} parent=5 // pred_fallthru
      _
    %p207 = scmp.le.s32.totalorder 1, %s11
    %p208 = scmp.lt.s32.totalorder %s11, 3
    %p209 = pnand %p207, %p208
    %p210 = pneg %p209
    // Predicated region
    $region37: #{mlp_forward.1} parent=5 // pred_check
      _
    $region38: #{mlp_forward.1} parent=5 // pred_check_branch
      %212 = sbr.rel (%p209) target = $region40
    $region39: #{mlp_forward.1} parent=5 // pred_region
      %s213 = ssub.s32 %s11, 1
      %s214 = smul.u32 2, %s21
      %p215 = scmp.lt.s32.totalorder %s20, 1
      %s216 = scalar_select %p215, %s20, 1
      %p217 = scmp.lt.s32.totalorder %s214, 1
      %s218 = scalar_select %p217, %s214, 1
      %s219 = smul.addr %s216, 8
      %s220 = sadd.s32 %s218, %s219
      %s221 = smul.addr %s220, 8
      %s222 = scalar_lea.vmem %s0, %s221
      %p223 = pneg %p51
      %p224 = pneg %p48
      %p225 = pneg %p72
      %p226 = pneg %p69
      %p227 = pneg %p93
      %p228 = pneg %p90
      %p229 = pneg %p114
      %p230 = pneg %p111
      %p231 = pneg %p135
      %p232 = pneg %p132
      %p233 = pneg %p163
      %p234 = pneg %p160
      %s235 = smul.u32 2, %s21
      %p236 = scmp.lt.s32.totalorder %s20, 1
      %s237 = scalar_select %p236, %s20, 1
      %p238 = scmp.lt.s32.totalorder %s235, 1
      %s239 = scalar_select %p238, %s235, 1
      %s240 = smul.addr %s237, 4
      %s241 = sadd.s32 %s239, %s240
      %s242 = smul.addr %s241, 8
      %s243 = scalar_lea.vmem %s5, %s242
      %s244 = smul.u32 2, %s21
      %p245 = scmp.lt.s32.totalorder %s20, 1
      %s246 = scalar_select %p245, %s20, 1
      %p247 = scmp.lt.s32.totalorder %s244, 1
      %s248 = scalar_select %p247, %s244, 1
      %s249 = smul.addr %s246, 8
      %s250 = sadd.s32 %s248, %s249
      %s251 = smul.addr %s250, 8
      %s252 = scalar_lea.vmem %s0, %s251
      %s253 = smul.u32 2, %s21
      %s254 = smul.u32 2, %s21
      %p255 = scmp.lt.s32.totalorder %s20, 1
      %s256 = scalar_select %p255, %s20, 1
      %p257 = scmp.lt.s32.totalorder %s254, 1
      %s258 = scalar_select %p257, %s254, 1
      %s259 = smul.addr %s256, 4
      %s260 = sadd.s32 %s258, %s259
      %s261 = smul.addr %s260, 8
      %s262 = scalar_lea.vmem %s5, %s261
      %s263 = smul.u32 2, %s21
      %v264 = vld [vmem:[%s1] sm:$0xff]
      %v265 = vld [vmem:[%s1 + $0x8] sm:$0xff]
      %v266 = vld [vmem:[%s1 + $0x10] sm:$0xff]
      %v267 = vld [vmem:[%s1 + $0x18] sm:$0xff]
      %v268 = vld [vmem:[%s3] sm:$0xff]
      %v269 = vld [vmem:[%s3 + $0x8] sm:$0xff]
      %v270 = vld [vmem:[%s2] sm:$0xff]
      %v271 = vld [vmem:[%s2 + $0x8] sm:$0xff]
      %v272 = vld [vmem:[%s2 + $0x10] sm:$0xff]
      %v273 = vld [vmem:[%s2 + $0x18] sm:$0xff]
      %v274 = vld [vmem:[%s4] sm:$0xff]
      %v275 = vld [vmem:[%s4 + $0x8] sm:$0xff]
      %v276 = vld [vmem:[%s252] sm:$0xff]
      %v277 = vld [vmem:[%s252 + $0x8] sm:$0xff]
      %v278 = vld [vmem:[%s252 + $0x10] sm:$0xff]
      %v279 = vld [vmem:[%s252 + $0x18] sm:$0xff]
      %v280 = vld [vmem:[%s252 + $0x20] sm:$0xff]
      %v281 = vld [vmem:[%s252 + $0x28] sm:$0xff]
      %v282 = vld [vmem:[%s252 + $0x30] sm:$0xff]
      %v283 = vld [vmem:[%s252 + $0x38] sm:$0xff]
      %285 = vset.pattern.permute.xlu0 0
      %286 = vperm.xlu0 %285, %v270
      %v287 = vpop.permute.xlu0 %286
      %290 = vset.pattern.permute.xlu0 0
      %291 = vperm.xlu0 %290, %v271
      %v292 = vpop.permute.xlu0 %291
      %295 = vset.pattern.permute.xlu0 0
      %296 = vperm.xlu0 %295, %v272
      %v297 = vpop.permute.xlu0 %296
      %300 = vset.pattern.permute.xlu0 0
      %301 = vperm.xlu0 %300, %v273
      %v302 = vpop.permute.xlu0 %301
      %vm304 = vcmask 261120
      %v306 = vsel %vm304, %v264, 0
      %v309 = vsel %vm304, %v265, 0
      %v312 = vsel %vm304, %v266, 0
      %v315 = vsel %vm304, %v267, 0
      %317 = vmatprep.subr.mxu0 %v277
      %318 = vmatpush1.msra.mxu0 %v276
      %319 = vmatprep.subr.mxu0 %v279
      %320 = vmatpush1.msra.mxu0 %v278
      %321 = vmatprep.subr.mxu0 %v281
      %322 = vmatpush1.msra.mxu0 %v280
      %323 = vmatprep.subr.mxu0 %v283
      %324 = vmatpush1.msra.mxu0 %v282
      %325 = vmatprep.subr.mxu0 0.0
      %326 = vmatpush1.msra.mxu0 0.0
      %327 = vmatprep.subr.mxu0 0.0
      %328 = vmatpush1.msra.mxu0 0.0
      %329 = vmatprep.subr.mxu0 0.0
      %330 = vmatpush1.msra.mxu0 0.0
      %331 = vmatprep.subr.mxu0 0.0
      %332 = vmatpush1.msra.mxu0 0.0
      %333 = vmatprep.subr.mxu0 0.0
      %334 = vmatpush1.msra.mxu0 0.0
      %335 = vmatprep.subr.mxu0 0.0
      %336 = vmatpush1.msra.mxu0 0.0
      %337 = vmatprep.subr.mxu0 0.0
      %338 = vmatpush1.msra.mxu0 0.0
      %339 = vmatprep.subr.mxu0 0.0
      %340 = vmatpush1.msra.mxu0 0.0
      %341 = vmatprep.subr.mxu0 0.0
      %342 = vmatpush1.msra.mxu0 0.0
      %343 = vmatprep.subr.mxu0 0.0
      %344 = vmatpush1.msra.mxu0 0.0
      %345 = vmatprep.subr.mxu0 0.0
      %346 = vmatpush1.msra.mxu0 0.0
      %347 = vmatprep.subr.mxu0 0.0
      %348 = vmatpush1.msra.mxu0 0.0
      %349 = vmatprep.subr.mxu0 0.0
      %350 = vmatpush1.msra.mxu0 0.0
      %351 = vmatprep.subr.mxu0 0.0
      %352 = vmatpush1.msra.mxu0 0.0
      %353 = vmatprep.subr.mxu0 0.0
      %354 = vmatpush1.msra.mxu0 0.0
      %355 = vmatprep.subr.mxu0 0.0
      %356 = vmatpush1.msra.mxu0 0.0
      %357 = vmatprep.subr.mxu0 0.0
      %358 = vmatpush1.msra.mxu0 0.0
      %359 = vmatprep.subr.mxu0 0.0
      %360 = vmatpush1.msra.mxu0 0.0
      %361 = vmatprep.subr.mxu0 0.0
      %362 = vmatpush1.msra.mxu0 0.0
      %363 = vmatprep.subr.mxu0 0.0
      %364 = vmatpush1.msra.mxu0 0.0
      %365 = vmatprep.subr.mxu0 0.0
      %366 = vmatpush1.msra.mxu0 0.0
      %367 = vmatprep.subr.mxu0 0.0
      %368 = vmatpush1.msra.mxu0 0.0
      %369 = vmatprep.subr.mxu0 0.0
      %370 = vmatpush1.msra.mxu0 0.0
      %371 = vmatprep.subr.mxu0 0.0
      %372 = vmatpush1.msra.mxu0 0.0
      %373 = vmatprep.subr.mxu0 0.0
      %374 = vmatpush1.msra.mxu0 0.0
      %375 = vmatprep.subr.mxu0 0.0
      %376 = vmatpush1.msra.mxu0 0.0
      %377 = vmatprep.subr.mxu0 0.0
      %378 = vmatpush1.msra.mxu0 0.0
      %379 = vmatprep.subr.mxu0 0.0
      %380 = vmatpush1.msra.mxu0 0.0
      %381 = vmatprep.mubr.f32.mxu0 0.0
      %382 = vmatmul.mubr.f32.gmra.mrb[0].mxu0 %v306
      %v383 = vpop.f32.mrb[0].mxu0
      %v384 = vadd.f32 %v287, %v383
      %v385 = vpop.f32.mrb[0].mxu0
      %v386 = vadd.f32 %v287, %v385
      %387 = vmatprep.mubr.f32.mxu0 0.0
      %388 = vmatmul.mubr.f32.gmra.mrb[0].mxu0 %v309
      %v389 = vpop.f32.mrb[0].mxu0
      %v390 = vadd.f32 %v292, %v389
      %v391 = vpop.f32.mrb[0].mxu0
      %v392 = vadd.f32 %v292, %v391
      %393 = vmatprep.mubr.f32.mxu0 0.0
      %394 = vmatmul.mubr.f32.gmra.mrb[0].mxu0 %v312
      %v395 = vpop.f32.mrb[0].mxu0
      %v396 = vadd.f32 %v297, %v395
      %v397 = vpop.f32.mrb[0].mxu0
      %v398 = vadd.f32 %v297, %v397
      %399 = vmatprep.mubr.f32.mxu0 0.0
      %400 = vmatmul.mubr.f32.gmra.mrb[0].mxu0 %v315
      %v401 = vpop.f32.mrb[0].mxu0
      %v402 = vadd.f32 %v302, %v401
      %v403 = vpop.f32.mrb[0].mxu0
      %v404 = vadd.f32 %v302, %v403
      %405 = vdwg.mxu0
      %v406 = vmul.f32 %v384, 0.1
      %v407 = vmul.f32 %v386, 0.1
      %v408 = vmul.f32 %v390, 0.1
      %v409 = vmul.f32 %v392, 0.1
      %v410 = vmul.f32 %v396, 0.1
      %v411 = vmul.f32 %v398, 0.1
      %v412 = vmul.f32 %v402, 0.1
      %v413 = vmul.f32 %v404, 0.1
      %v414 = vmax.f32 %v384, %v406
      %v415 = vmax.f32 %v386, %v407
      %v416 = vmax.f32 %v390, %v408
      %v417 = vmax.f32 %v392, %v409
      %v418 = vmax.f32 %v396, %v410
      %v419 = vmax.f32 %v398, %v411
      %v420 = vmax.f32 %v402, %v412
      %v421 = vmax.f32 %v404, %v413
      %423 = vset.pattern.permute.xlu0 0
      %424 = vperm.xlu0 %423, %v274
      %v425 = vpop.permute.xlu0 %424
      %428 = vset.pattern.permute.xlu0 0
      %429 = vperm.xlu0 %428, %v275
      %v430 = vpop.permute.xlu0 %429
      %v433 = vsel %vm304, %v268, 0
      %v436 = vsel %vm304, %v269, 0
      %438 = vmatprep.subr.mxu0 %v415
      %439 = vmatpush1.msra.mxu0 %v414
      %440 = vmatprep.subr.mxu0 %v417
      %441 = vmatpush1.msra.mxu0 %v416
      %442 = vmatprep.subr.mxu0 %v419
      %443 = vmatpush1.msra.mxu0 %v418
      %444 = vmatprep.subr.mxu0 %v421
      %445 = vmatpush1.msra.mxu0 %v420
      %446 = vmatprep.subr.mxu0 0.0
      %447 = vmatpush1.msra.mxu0 0.0
      %448 = vmatprep.subr.mxu0 0.0
      %449 = vmatpush1.msra.mxu0 0.0
      %450 = vmatprep.subr.mxu0 0.0
      %451 = vmatpush1.msra.mxu0 0.0
      %452 = vmatprep.subr.mxu0 0.0
      %453 = vmatpush1.msra.mxu0 0.0
      %454 = vmatprep.subr.mxu0 0.0
      %455 = vmatpush1.msra.mxu0 0.0
      %456 = vmatprep.subr.mxu0 0.0
      %457 = vmatpush1.msra.mxu0 0.0
      %458 = vmatprep.subr.mxu0 0.0
      %459 = vmatpush1.msra.mxu0 0.0
      %460 = vmatprep.subr.mxu0 0.0
      %461 = vmatpush1.msra.mxu0 0.0
      %462 = vmatprep.subr.mxu0 0.0
      %463 = vmatpush1.msra.mxu0 0.0
      %464 = vmatprep.subr.mxu0 0.0
      %465 = vmatpush1.msra.mxu0 0.0
      %466 = vmatprep.subr.mxu0 0.0
      %467 = vmatpush1.msra.mxu0 0.0
      %468 = vmatprep.subr.mxu0 0.0
      %469 = vmatpush1.msra.mxu0 0.0
      %470 = vmatprep.subr.mxu0 0.0
      %471 = vmatpush1.msra.mxu0 0.0
      %472 = vmatprep.subr.mxu0 0.0
      %473 = vmatpush1.msra.mxu0 0.0
      %474 = vmatprep.subr.mxu0 0.0
      %475 = vmatpush1.msra.mxu0 0.0
      %476 = vmatprep.subr.mxu0 0.0
      %477 = vmatpush1.msra.mxu0 0.0
      %478 = vmatprep.subr.mxu0 0.0
      %479 = vmatpush1.msra.mxu0 0.0
      %480 = vmatprep.subr.mxu0 0.0
      %481 = vmatpush1.msra.mxu0 0.0
      %482 = vmatprep.subr.mxu0 0.0
      %483 = vmatpush1.msra.mxu0 0.0
      %484 = vmatprep.subr.mxu0 0.0
      %485 = vmatpush1.msra.mxu0 0.0
      %486 = vmatprep.subr.mxu0 0.0
      %487 = vmatpush1.msra.mxu0 0.0
      %488 = vmatprep.subr.mxu0 0.0
      %489 = vmatpush1.msra.mxu0 0.0
      %490 = vmatprep.subr.mxu0 0.0
      %491 = vmatpush1.msra.mxu0 0.0
      %492 = vmatprep.subr.mxu0 0.0
      %493 = vmatpush1.msra.mxu0 0.0
      %494 = vmatprep.subr.mxu0 0.0
      %495 = vmatpush1.msra.mxu0 0.0
      %496 = vmatprep.subr.mxu0 0.0
      %497 = vmatpush1.msra.mxu0 0.0
      %498 = vmatprep.subr.mxu0 0.0
      %499 = vmatpush1.msra.mxu0 0.0
      %500 = vmatprep.subr.mxu0 0.0
      %501 = vmatpush1.msra.mxu0 0.0
      %502 = vmatprep.mubr.f32.mxu0 0.0
      %503 = vmatmul.mubr.f32.gmra.mrb[0].mxu0 %v433
      %v504 = vpop.f32.mrb[0].mxu0
      %v505 = vadd.f32 %v425, %v504
      %v506 = vpop.f32.mrb[0].mxu0
      %v507 = vadd.f32 %v425, %v506
      %508 = vmatprep.mubr.f32.mxu0 0.0
      %509 = vmatmul.mubr.f32.gmra.mrb[0].mxu0 %v436
      %v510 = vpop.f32.mrb[0].mxu0
      %v511 = vadd.f32 %v430, %v510
      %v512 = vpop.f32.mrb[0].mxu0
      %v513 = vadd.f32 %v430, %v512
      %514 = vdwg.mxu0
      %515 = vst [vmem:[%s262] sm:$0xff] %v505
      %516 = vst [vmem:[%s262 + $0x8] sm:$0xff] %v507
      %517 = vst [vmem:[%s262 + $0x10] sm:$0xff] %v511
      %518 = vst [vmem:[%s262 + $0x18] sm:$0xff] %v513
      %s519 = smul.u32 2, %s21
      %p520 = scmp.lt.s32.totalorder %s20, 1
      %s521 = scalar_select %p520, %s20, 1
      %p522 = scmp.lt.s32.totalorder %s519, 1
      %s523 = scalar_select %p522, %s519, 1
      %s524 = smul.addr %s521, 4
      %s525 = sadd.s32 %s523, %s524
      %s526 = smul.addr %s525, 8
      %s527 = scalar_lea.vmem %s5, %s526
      // Predicated region
      $region41: #{mlp_forward.1} parent=39 // pred_check
        %p528 = pneg %p160
      $region42: #{mlp_forward.1} parent=39 // pred_check_branch
        %530 = sbr.rel (%p528) target = $region44
      $region43: #{mlp_forward.1} parent=39 // pred_region
        %s531 = smul.u32 2, %s21
      $region44: #{mlp_forward.1} parent=39 // pred_fallthru
        _
    $region40: #{mlp_forward.1} parent=5 // pred_fallthru
      _
    %p532 = scmp.le.s32.totalorder 2, %s11
    // Predicated region
    $region45: #{mlp_forward.1} parent=5 // pred_check
      %p533 = pneg %p532
    $region46: #{mlp_forward.1} parent=5 // pred_check_branch
      %535 = sbr.rel (%p533) target = $region48
    $region47: #{mlp_forward.1} parent=5 // pred_region
      %s536 = ssub.s32 %s11, 2
      // Predicated region
      $region49: #{mlp_forward.1} parent=47 // pred_check
        %p537 = pneg %p166
      $region50: #{mlp_forward.1} parent=47 // pred_check_branch
        %539 = sbr.rel (%p537) target = $region52
      $region51: #{mlp_forward.1} parent=47 // pred_region
        %s540 = smul.u32 2, %s23
        %p541 = scmp.lt.s32.totalorder %s22, 1
        %s542 = scalar_select %p541, %s22, 1
        %p543 = scmp.lt.s32.totalorder %s540, 1
        %s544 = scalar_select %p543, %s540, 1
        %s545 = smul.addr %s542, 4
        %s546 = sadd.s32 %s544, %s545
        %s547 = smul.addr %s546, 8
        %s548 = scalar_lea.vmem %s5, %s547
      $region52: #{mlp_forward.1} parent=47 // pred_fallthru
        _
    $region48: #{mlp_forward.1} parent=5 // pred_fallthru
      _
  $region6: #{mlp_forward.1} parent=0 // loop_footer
    %s15 = sadd.s32 1, %s11
  $region7: #{mlp_forward.1} parent=0 // loop_footer_branch
    %10 = sbr.rel target = $region3
  $region8: #{mlp_forward.1} parent=0 // loop_exit
    _

</llo_original>
